<compile_context>
chip_gen: v7x
topology: tpu7x:2x2x1
jax: 0.10.0
libtpu: 0.0.40
codegen_flags: <defaults>
</compile_context>

<pallas_src>
import functools

import jax
import jax.numpy as jnp
from jax.experimental import pallas as pl
from jax.experimental.pallas import tpu as pltpu

LANES = 128      # lane width (fixed by vreg layout)
TM_MAX = 4096    # max sublane rows per grid step (2 MiB f32 per input block)


def _round_up(a, b):
    return (a + b - 1) // b * b


def _num_cores():
    """2 TensorCores only on v7x; v5e/v6e have a single TC."""
    try:
        kind = jax.devices()[0].device_kind.lower()
    except Exception:
        return 1
    return 2 if ("v7" in kind or "tpu7" in kind) else 1


def _focal_loss_kernel(x_ref, t_ref, o_ref, acc_ref, *,
                       alpha, gamma, tm, rows_per_core,
                       full_rows, rem, has_pad):
    """One (tm, 128) tile: stable BCE-with-logits + focal weighting.

    acc_ref is a single-vreg (8, 128) f32 accumulator, zeroed at the start of
    each core's reduction sequence and reduced/stored once in the epilogue.
    o_ref is that core's (1, 128) lane-dense partial-sum row.
    """
    c = pl.program_id(0)           # core axis (parallel on v7x, trivial else)
    i = pl.program_id(1)           # reduction axis
    nsteps = pl.num_programs(1)

    @pl.when(i == 0)
    def _init():
        acc_ref[...] = jnp.zeros_like(acc_ref)

    x = x_ref[...].astype(jnp.float32)
    t = t_ref[...].astype(jnp.float32)

    # Numerically stable BCE with logits (== F.binary_cross_entropy_with_logits):
    #   bce = max(x, 0) - x * t + log1p(exp(-|x|))
    bce = jnp.maximum(x, 0.0) - x * t + jnp.log1p(jnp.exp(-jnp.abs(x)))
    pt = jnp.exp(-bce)
    omp = 1.0 - pt

    # Focal weight: specialize small integer gamma (default 2) to multiplies
    # to avoid the exp/log pair a float pow would cost on the single EUP slot.
    g = float(gamma)
    if g == int(g) and 0 <= int(g) <= 8:
        gi = int(g)
        if gi == 0:
            w = None
        else:
            w = omp
            for _ in range(gi - 1):
                w = w * omp
    else:
        w = omp ** g
    focal = (alpha * bce) if w is None else (alpha * w * bce)

    def _reduce(v):
        # Pure VPU tree-add of tm//8 vregs down to one (8, 128) vreg.
        return jnp.sum(v.reshape(tm // 8, 8, LANES), axis=0)

    if has_pad:
        # Row-unit comparisons (no *128) — immune to int32 overflow.
        block_end_row = c * rows_per_core + (i + 1) * tm
        tile_has_pad = block_end_row > full_rows

        @pl.when(tile_has_pad)
        def _masked():
            row_in_tile = jax.lax.broadcasted_iota(jnp.int32, (tm, LANES), 0)
            grow = c * rows_per_core + i * tm + row_in_tile   # global row index
            valid = grow < full_rows
            if rem:   # single partially-valid boundary row
                lane = jax.lax.broadcasted_iota(jnp.int32, (tm, LANES), 1)
                valid = valid | ((grow == full_rows) & (lane < rem))
            acc_ref[...] += _reduce(jnp.where(valid, focal, 0.0))

        @pl.when(jnp.logical_not(tile_has_pad))
        def _unmasked():
            acc_ref[...] += _reduce(focal)
    else:
        acc_ref[...] += _reduce(focal)

    @pl.when(i == nsteps - 1)
    def _finalize():
        # Single 8 -> 1 sublane reduce + lane-dense (1, 128) store per core.
        o_ref[...] = jnp.sum(acc_ref[...], axis=0, keepdims=True)


def focal_loss(inputs, targets, alpha=0.25, gamma=2.0):
    """Pallas TPU implementation of FocalLoss.forward (returns a scalar)."""
    assert inputs.shape == targets.shape
    n_total = int(inputs.size)
    num_cores = _num_cores()

    # Keep the native dtype through HBM (bf16 stays bf16); cast in-kernel.
    x = jnp.ravel(inputs)
    t = jnp.ravel(targets)

    # Tiling: pick tm (multiple of 8, <= TM_MAX) that divides the per-core row
    # count exactly, so every block is full and only the genuine n_total tail
    # ever takes the masked path.  Padding is < num_cores * steps * 8 rows.
    rows_needed = pl.cdiv(n_total, LANES)
    rows_per_core_min = pl.cdiv(rows_needed, num_cores)
    steps = pl.cdiv(rows_per_core_min, TM_MAX)
    tm = _round_up(pl.cdiv(rows_per_core_min, steps), 8)
    rows_per_core = steps * tm
    n_flat = num_cores * rows_per_core * LANES

    if n_flat != n_total:
        x = jnp.pad(x, (0, n_flat - n_total))
        t = jnp.pad(t, (0, n_flat - n_total))

    x = x.reshape(num_cores, rows_per_core, LANES)
    t = t.reshape(num_cores, rows_per_core, LANES)

    kernel = functools.partial(
        _focal_loss_kernel,
        alpha=float(alpha), gamma=float(gamma),
        tm=tm, rows_per_core=rows_per_core,
        full_rows=n_total // LANES, rem=n_total % LANES,
        has_pad=(n_flat != n_total))

    in_spec = pl.BlockSpec((None, tm, LANES), lambda c, i: (c, i, 0))
    # Per-core lane-dense partial sums; block == full trailing (1, 128) slice.
    out_spec = pl.BlockSpec((None, 1, LANES), lambda c, i: (c, 0, 0))

    cost = pl.CostEstimate(
        flops=12 * n_total,
        transcendentals=3 * n_total,
        bytes_accessed=n_flat * (x.dtype.itemsize + t.dtype.itemsize)
        + num_cores * LANES * 4,
    )

    def run(dims):
        return pl.pallas_call(
            kernel,
            out_shape=jax.ShapeDtypeStruct((num_cores, 1, LANES), jnp.float32),
            grid_spec=pltpu.PrefetchScalarGridSpec(
                num_scalar_prefetch=0,
                grid=(num_cores, steps),
                in_specs=[in_spec, in_spec],
                out_specs=out_spec,
                scratch_shapes=[pltpu.VMEM((8, LANES), jnp.float32)],
            ),
            compiler_params=pltpu.CompilerParams(
                dimension_semantics=dims,
                # Double-buffered 2 MiB f32 blocks for two inputs need ~8 MiB;
                # raise above v5e's 16 MiB default to keep full pipelining.
                vmem_limit_bytes=32 * 1024 * 1024),
            cost_estimate=cost,
        )(x, t)

    if num_cores > 1:
        # v7x: explicitly request a per-TensorCore split of the core axis;
        # fall back to plain PARALLEL if this lowering path is rejected.
        try:
            partial_sums = jax.block_until_ready(
                run((pltpu.CORE_PARALLEL, pltpu.ARBITRARY)))
        except Exception:
            partial_sums = run((pltpu.PARALLEL, pltpu.ARBITRARY))
    else:
        partial_sums = run((pltpu.ARBITRARY, pltpu.ARBITRARY))

    return jnp.sum(partial_sums) / jnp.float32(n_total)


def _focal_loss_ref(inputs, targets, alpha=0.25, gamma=2.0):
    """Pure-JAX reference (mirrors the PyTorch module exactly)."""
    x = inputs.astype(jnp.float32)
    t = targets.astype(jnp.float32)
    bce = jnp.maximum(x, 0.0) - x * t + jnp.log1p(jnp.exp(-jnp.abs(x)))
    pt = jnp.exp(-bce)
    return jnp.mean(alpha * (1.0 - pt) ** gamma * bce)


if __name__ == "__main__":
    key = jax.random.PRNGKey(0)
    k1, k2 = jax.random.split(key)

    # NCHW, as the PyTorch module would receive.
    shape = (2, 4, 16, 16)
    inputs = jax.random.normal(k1, shape, dtype=jnp.float32) * 2.0
    targets = (jax.random.uniform(k2, shape) > 0.5).astype(jnp.float32)

    out = focal_loss(inputs, targets, alpha=0.25, gamma=2.0)
    out = jax.block_until_ready(out)

    ref = _focal_loss_ref(inputs, targets, alpha=0.25, gamma=2.0)
    assert jnp.allclose(out, ref, rtol=1e-5, atol=1e-6), (out, ref)

    print("KERNEL_OK")
</pallas_src>

<mosaic_0001>
module attributes {stable_mosaic.version = 11 : i64} {
  func.func @_focal_loss_kernel(%arg0: i32, %arg1: i32, %arg2: memref<1x16x128xf32, #tpu.memory_space<vmem>>, %arg3: memref<1x16x128xf32, #tpu.memory_space<vmem>>, %arg4: memref<1x1x128xf32, #tpu.memory_space<vmem>>, %arg5: memref<8x128xf32, #tpu.memory_space<vmem>>) attributes {dimension_semantics = [#tpu.dimension_semantics<arbitrary>, #tpu.dimension_semantics<arbitrary>], iteration_bounds = array<i64: 1, 1>, scalar_prefetch = 0 : i64, scratch_operands = 1 : i64, tpu.core_type = #tpu.core_type<tc>, window_params = [{transform_indices = @transform_0, window_bounds = array<i64: 1, 16, 128>}, {transform_indices = @transform_1, window_bounds = array<i64: 1, 16, 128>}, {transform_indices = @transform_2, window_bounds = array<i64: 1, 1, 128>}]} {
    %c0_i32 = arith.constant 0 : i32
    %0 = arith.cmpi eq, %arg1, %c0_i32 : i32
    %1 = arith.extui %0 : i1 to i32
    %c0_i32_0 = arith.constant 0 : i32
    %2 = arith.cmpi ne, %1, %c0_i32_0 : i32
    scf.if %2 {
      %cst_17 = arith.constant 0.000000e+00 : f32
      %34 = vector.broadcast %cst_17 : f32 to vector<8x128xf32>
      %c0_18 = arith.constant 0 : index
      %c0_19 = arith.constant 0 : index
      %35 = vector.load %arg5[%c0_18, %c0_19] : memref<8x128xf32, #tpu.memory_space<vmem>>, vector<8x128xf32>
      tpu.vector_store %arg5[%c0_18, %c0_19], %34 {strides = array<i32>} : memref<8x128xf32, #tpu.memory_space<vmem>>, vector<8x128xf32>,
    } else {
    }
    %c0 = arith.constant 0 : index
    %c0_1 = arith.constant 0 : index
    %c0_2 = arith.constant 0 : index
    %3 = vector.load %arg2[%c0, %c0_1, %c0_2] : memref<1x16x128xf32, #tpu.memory_space<vmem>>, vector<1x16x128xf32>
    %4 = vector.shape_cast %3 : vector<1x16x128xf32> to vector<16x128xf32>
    %c0_3 = arith.constant 0 : index
    %c0_4 = arith.constant 0 : index
    %c0_5 = arith.constant 0 : index
    %5 = vector.load %arg3[%c0_3, %c0_4, %c0_5] : memref<1x16x128xf32, #tpu.memory_space<vmem>>, vector<1x16x128xf32>
    %6 = vector.shape_cast %5 : vector<1x16x128xf32> to vector<16x128xf32>
    %cst = arith.constant 0.000000e+00 : f32
    %7 = vector.broadcast %cst : f32 to vector<16x128xf32>
    %8 = arith.maximumf %4, %7 : vector<16x128xf32>
    %9 = arith.mulf %4, %6 : vector<16x128xf32>
    %10 = arith.subf %8, %9 : vector<16x128xf32>
    %11 = math.absf %4 : vector<16x128xf32>
    %cst_6 = arith.constant 0.000000e+00 : f32
    %12 = vector.broadcast %cst_6 : f32 to vector<16x128xf32>
    %13 = arith.subf %12, %11 : vector<16x128xf32>
    %14 = math.exp %13 : vector<16x128xf32>
    %15 = math.log1p %14 : vector<16x128xf32>
    %16 = arith.addf %10, %15 : vector<16x128xf32>
    %cst_7 = arith.constant 0.000000e+00 : f32
    %17 = vector.broadcast %cst_7 : f32 to vector<16x128xf32>
    %18 = arith.subf %17, %16 : vector<16x128xf32>
    %19 = math.exp %18 : vector<16x128xf32>
    %cst_8 = arith.constant 1.000000e+00 : f32
    %20 = vector.broadcast %cst_8 : f32 to vector<16x128xf32>
    %21 = arith.subf %20, %19 : vector<16x128xf32>
    %22 = arith.mulf %21, %21 : vector<16x128xf32>
    %cst_9 = arith.constant 2.500000e-01 : f32
    %23 = vector.broadcast %cst_9 : f32 to vector<16x128xf32>
    %24 = arith.mulf %23, %22 : vector<16x128xf32>
    %25 = arith.mulf %24, %16 : vector<16x128xf32>
    %c0_10 = arith.constant 0 : index
    %c0_11 = arith.constant 0 : index
    %26 = vector.load %arg5[%c0_10, %c0_11] : memref<8x128xf32, #tpu.memory_space<vmem>>, vector<8x128xf32>
    %27 = vector.shape_cast %25 : vector<16x128xf32> to vector<2x8x128xf32>
    %cst_12 = arith.constant dense<0.000000e+00> : vector<8x128xf32>
    %28 = vector.multi_reduction <add>, %27, %cst_12 [0] : vector<2x8x128xf32> to vector<8x128xf32>
    %29 = arith.addf %26, %28 : vector<8x128xf32>
    %c0_13 = arith.constant 0 : index
    %c0_14 = arith.constant 0 : index
    %30 = vector.load %arg5[%c0_13, %c0_14] : memref<8x128xf32, #tpu.memory_space<vmem>>, vector<8x128xf32>
    tpu.vector_store %arg5[%c0_13, %c0_14], %29 {strides = array<i32>} : memref<8x128xf32, #tpu.memory_space<vmem>>, vector<8x128xf32>,
    %c0_i32_15 = arith.constant 0 : i32
    %31 = arith.cmpi eq, %arg1, %c0_i32_15 : i32
    %32 = arith.extui %31 : i1 to i32
    %c0_i32_16 = arith.constant 0 : i32
    %33 = arith.cmpi ne, %32, %c0_i32_16 : i32
    scf.if %33 {
      %c0_17 = arith.constant 0 : index
      %c0_18 = arith.constant 0 : index
      %34 = vector.load %arg5[%c0_17, %c0_18] : memref<8x128xf32, #tpu.memory_space<vmem>>, vector<8x128xf32>
      %cst_19 = arith.constant dense<0.000000e+00> : vector<128xf32>
      %35 = vector.multi_reduction <add>, %34, %cst_19 [0] : vector<8x128xf32> to vector<128xf32>
      %36 = vector.shape_cast %35 : vector<128xf32> to vector<1x128xf32>
      %c0_20 = arith.constant 0 : index
      %c0_21 = arith.constant 0 : index
      %c0_22 = arith.constant 0 : index
      %37 = vector.load %arg4[%c0_20, %c0_21, %c0_22] : memref<1x1x128xf32, #tpu.memory_space<vmem>>, vector<1x1x128xf32>
      %38 = vector.shape_cast %37 : vector<1x1x128xf32> to vector<1x128xf32>
      %39 = vector.shape_cast %36 : vector<1x128xf32> to vector<1x1x128xf32>
      tpu.vector_store %arg4[%c0_20, %c0_21, %c0_22], %39 {strides = array<i32>} : memref<1x1x128xf32, #tpu.memory_space<vmem>>, vector<1x1x128xf32>,
    } else {
    }
    return
  }
  func.func @transform_0(%arg0: i32, %arg1: i32) -> (i32, i32, i32) {
    %c0_i32 = arith.constant 0 : i32
    %c0_i32_0 = arith.constant 0 : i32
    return %arg0, %arg1, %c0_i32 : i32, i32, i32
  }
  func.func @transform_1(%arg0: i32, %arg1: i32) -> (i32, i32, i32) {
    %c0_i32 = arith.constant 0 : i32
    %c0_i32_0 = arith.constant 0 : i32
    return %arg0, %arg1, %c0_i32 : i32, i32, i32
  }
  func.func @transform_2(%arg0: i32, %arg1: i32) -> (i32, i32, i32) {
    %c0_i32 = arith.constant 0 : i32
    %c0_i32_0 = arith.constant 0 : i32
    %c0_i32_1 = arith.constant 0 : i32
    return %arg0, %c0_i32, %c0_i32_0 : i32, i32, i32
  }
}

</mosaic_0001>

<llo_original>
// kernel: tpu_custom_call.1
$region0: #{tpu_custom_call.1}
  #allocation0 [shape = 'u32[]', space=smem, size = 0x4, offset = 0x4, fixed_abs, tag = 'smem constant byte address 0x4 - core index']
  #allocation1 [shape = 'u32[144,128]{1,0:T(1,128)}', space=vmem, size = 0x12000, scoped, tag = 'internal scratch']
  #allocation2 [shape = 'f32[8,128]{1,0:T(8,128)}', space=vmem, size = 0x1000, scoped, tag = 'scratch operand']
  %s0 = inlined_call_operand.hbm [shape: f32[1,16,128], index: 0, kind: input, shape index: {}]
  %s1 = inlined_call_operand.hbm [shape: f32[1,16,128], index: 1, kind: input, shape index: {}]
  %s2 = inlined_call_operand.hbm [shape: f32[1,1,128], index: 2, kind: output, shape index: {}]
  %s3 = sld [smem:[#allocation0]]
  $region34: #{tpu_custom_call.1} parent=0
    _
  %s5 = ssub.s32 1, %s3
  %s6 = scalar_select 0, %s5, %s3
  $region1: #{tpu_custom_call.1} parent=0
    #allocation3 [shape = 'u8[8192]{0}', space=vmem, size = 0x2000, scoped, tag = 'input window, operand 0, single buffered']
    #allocation4 [shape = 's32[1]{0}', space=sflag, size = 0x4, scoped, tag = 'scoped memory for tpu_custom_call.1']
    #allocation5 [shape = 's32[1]{0}', space=sflag, size = 0x4, scoped, tag = 'scoped memory for tpu_custom_call.1']
    #allocation6 [shape = 'u8[8192]{0}', space=vmem, size = 0x2000, scoped, tag = 'input window, operand 1, single buffered']
    #allocation7 [shape = 's32[1]{0}', space=sflag, size = 0x4, scoped, tag = 'scoped memory for tpu_custom_call.1']
    #allocation8 [shape = 'u8[512]{0}', space=vmem, size = 0x400, scoped, tag = 'output window, operand 0, single buffered']
    %7 = vsyncpa [#allocation4], 0
    %8 = vsyncpa [#allocation7], 0
    %9 = vsyncpa [#allocation5], 0
    // Predicated region
    $region2: #{tpu_custom_call.1} parent=1 // pred_check
      _
    $region3: #{tpu_custom_call.1} parent=1 // pred_check_branch
      %11 = sbr.rel (0) target = $region5
    $region4: #{tpu_custom_call.1} parent=1 // pred_region
      %s13 = ssub.s32 256, 256
      %14 = vsyncadd [#allocation4], %s13
      %s15 = sshll.u32 [#allocation3], 4
      %s16 = int_to_ptr.vmem [resolvable:$true] %s15
      %21 = dma.hbm_to_vmem [thread:$0]  %s0, 256, %s16, [#allocation4], 128, 128, 8
    $region5: #{tpu_custom_call.1} parent=1 // pred_fallthru
      _
    // Predicated region
    $region6: #{tpu_custom_call.1} parent=1 // pred_check
      _
    $region7: #{tpu_custom_call.1} parent=1 // pred_check_branch
      %23 = sbr.rel (0) target = $region9
    $region8: #{tpu_custom_call.1} parent=1 // pred_region
      %s25 = ssub.s32 256, 256
      %26 = vsyncadd [#allocation7], %s25
      %s27 = sshll.u32 [#allocation6], 4
      %s28 = int_to_ptr.vmem [resolvable:$true] %s27
      %33 = dma.hbm_to_vmem [thread:$0]  %s1, 256, %s28, [#allocation7], 128, 128, 8
    $region9: #{tpu_custom_call.1} parent=1 // pred_fallthru
      _
    // Predicated region
    $region10: #{tpu_custom_call.1} parent=1 // pred_check
      _
    $region11: #{tpu_custom_call.1} parent=1 // pred_check_branch
      %35 = sbr.rel (0) target = $region13
    $region12: #{tpu_custom_call.1} parent=1 // pred_region
      %36 = dma.done [#allocation4], 256
    $region13: #{tpu_custom_call.1} parent=1 // pred_fallthru
      _
    // Predicated region
    $region14: #{tpu_custom_call.1} parent=1 // pred_check
      _
    $region15: #{tpu_custom_call.1} parent=1 // pred_check_branch
      %38 = sbr.rel (0) target = $region17
    $region16: #{tpu_custom_call.1} parent=1 // pred_region
      %39 = dma.done [#allocation7], 256
    $region17: #{tpu_custom_call.1} parent=1 // pred_fallthru
      _
    %p40 = scmp.eq.s32.totalorder 0, 0
    // Predicated region
    $region18: #{tpu_custom_call.1} parent=1 // pred_check
      %p41 = pneg %p40
    $region19: #{tpu_custom_call.1} parent=1 // pred_check_branch
      %43 = sbr.rel (%p41) target = $region21
    $region20: #{tpu_custom_call.1} parent=1 // pred_region
      %44 = vst [vmem:[#allocation2] sm:$0xff] 0.0
    $region21: #{tpu_custom_call.1} parent=1 // pred_fallthru
      _
    %v45 = vld [vmem:[#allocation3] sm:$0xff]
    %v46 = vld [vmem:[#allocation3 + $0x8] sm:$0xff]
    %v47 = vld [vmem:[#allocation6] sm:$0xff]
    %v48 = vld [vmem:[#allocation6 + $0x8] sm:$0xff]
    %v49 = vmax.f32 %v45, 0.0
    %v50 = vmax.f32 %v46, 0.0
    %v51 = vmul.f32 %v45, %v47
    %v52 = vmul.f32 %v46, %v48
    %v53 = vsub.f32 %v49, %v51
    %v54 = vsub.f32 %v50, %v52
    %v55 = vand.u32 2147483647, %v45
    %v56 = vand.u32 2147483647, %v46
    %v57 = vsub.f32 0.0, %v55
    %v58 = vsub.f32 0.0, %v56
    %v59 = vmul.f32 %v57, 1.442695
    %v60 = vpow.pop %v59
    %v61 = vmul.f32 %v58, 1.442695
    %v62 = vpow.pop %v61
    %v63 = vadd.f32 %v60, 1.0
    %v64 = vlog2.pop %v63
    %v65 = vmul.f32 %v64, 0.6931472
    %v66 = vmul.f32 -0.5, %v60
    %v67 = vadd.f32 %v66, 1.0
    %v68 = vmul.f32 %v67, %v60
    %v69 = vand.u32 2147483647, %v60
    %vm70 = vcmp.lt.f32.partialorder %v69, 0.0004427343
    %v71 = vsel %vm70, %v68, %v65
    %v72 = vadd.f32 %v62, 1.0
    %v73 = vlog2.pop %v72
    %v74 = vmul.f32 %v73, 0.6931472
    %v75 = vmul.f32 -0.5, %v62
    %v76 = vadd.f32 %v75, 1.0
    %v77 = vmul.f32 %v76, %v62
    %v78 = vand.u32 2147483647, %v62
    %vm79 = vcmp.lt.f32.partialorder %v78, 0.0004427343
    %v80 = vsel %vm79, %v77, %v74
    %v81 = vadd.f32 %v53, %v71
    %v82 = vadd.f32 %v54, %v80
    %v83 = vsub.f32 0.0, %v81
    %v84 = vsub.f32 0.0, %v82
    %v85 = vmul.f32 %v83, 1.442695
    %v86 = vpow.pop %v85
    %v87 = vmul.f32 %v84, 1.442695
    %v88 = vpow.pop %v87
    %v89 = vsub.f32 1.0, %v86
    %v90 = vsub.f32 1.0, %v88
    %v91 = vmul.f32 %v89, %v89
    %v92 = vmul.f32 %v90, %v90
    %v93 = vmul.f32 %v91, 0.25
    %v94 = vmul.f32 %v92, 0.25
    %v95 = vmul.f32 %v93, %v81
    %v96 = vmul.f32 %v94, %v82
    %v97 = vld [vmem:[#allocation2] sm:$0xff]
    %v98 = vadd.f32 %v95, %v96
    %v99 = vadd.f32 %v97, %v98
    %100 = vst [vmem:[#allocation2] sm:$0xff] %v99
    // Predicated region
    $region22: #{tpu_custom_call.1} parent=1 // pred_check
      %p101 = pneg %p40
    $region23: #{tpu_custom_call.1} parent=1 // pred_check_branch
      %103 = sbr.rel (%p101) target = $region25
    $region24: #{tpu_custom_call.1} parent=1 // pred_region
      %v104 = vld [vmem:[#allocation2] sm:$0xff]
      %v105 = vrot.slane %v104, 4
      %v106 = vadd.f32 %v104, %v105
      %v107 = vrot.slane %v106, 2
      %v108 = vadd.f32 %v106, %v107
      %v109 = vrot.slane %v108, 1
      %v110 = vadd.f32 %v108, %v109
      %111 = vst [vmem:[#allocation8] sm:$0x1] %v110
    $region25: #{tpu_custom_call.1} parent=1 // pred_fallthru
      _
    // Predicated region
    $region26: #{tpu_custom_call.1} parent=1 // pred_check
      _
    $region27: #{tpu_custom_call.1} parent=1 // pred_check_branch
      %113 = sbr.rel (0) target = $region29
    $region28: #{tpu_custom_call.1} parent=1 // pred_region
      %s115 = ssub.s32 16, 16
      %116 = vsyncadd [#allocation5], %s115
      %s118 = sshll.u32 [#allocation8], 4
      %s119 = int_to_ptr.vmem [resolvable:$true] %s118
      %121 = dma.vmem_to_hbm [thread:$0]  %s119, 16, %s2, [#allocation5]
    $region29: #{tpu_custom_call.1} parent=1 // pred_fallthru
      _
    // Predicated region
    $region30: #{tpu_custom_call.1} parent=1 // pred_check
      _
    $region31: #{tpu_custom_call.1} parent=1 // pred_check_branch
      %123 = sbr.rel (0) target = $region33
    $region32: #{tpu_custom_call.1} parent=1 // pred_region
      %124 = dma.done [#allocation5], 16
    $region33: #{tpu_custom_call.1} parent=1 // pred_fallthru
      _
    %125 = vsyncpa [#allocation4], 1
    %126 = vsyncpa [#allocation7], 1
    %127 = vsyncpa [#allocation5], 1

</llo_original>
